<compile_context>
chip_gen: v7x
topology: tpu7x:2x2x1
jax: 0.10.0
libtpu: 0.0.40
codegen_flags: <defaults>
</compile_context>

<pallas_src>
import jax
import jax.numpy as jnp
from jax.experimental import pallas as pl
from jax.experimental.pallas import tpu as pltpu

_LANE = 128


def _bkr_mean_kernel(x_ref, w_ref, mean_ref):
    # x_ref:    (tb, td)  batch x feature tile of x
    # w_ref:    (1, td)   chunk of kernel.sum(axis=1) (resident across batch axis)
    # mean_ref: (1, tb)   lane-dense output row, resident across the feature axis
    k = pl.program_id(1)

    # (1, td) @ (td, tb) on the (otherwise idle) MXU; the transpose of the rhs
    # is fused into the matmul (standard dot(a, b.T) pattern), and the result
    # lands lane-dense along the batch tile.
    acc = jnp.dot(w_ref[...], x_ref[...].T, preferred_element_type=jnp.float32)

    @pl.when(k == 0)
    def _():
        mean_ref[...] = acc

    @pl.when(k != 0)
    def _():
        mean_ref[...] += acc


def _pick_tiles(B, D, *, vmem_budget_bytes=12 * 1024 * 1024):
    """Pick (tb, td) tile sizes for the (B, D) input.

    The budget covers the double-buffered x input (2 * tb * td * 4 bytes); the
    w chunk and the (1, tb) output row are negligible.  tb is a multiple of
    128 so the output row is lane-dense; td is either the full D or a multiple
    of 128.  Stays well under v5e's 16 MiB scoped-VMEM default and v7x's
    64 MiB physical VMEM without touching vmem_limit_bytes.
    """
    itemsize = 4
    rows_budget = vmem_budget_bytes // (2 * max(D, 1) * itemsize)
    if rows_budget >= _LANE:
        # Full feature dim per tile; grow the batch tile as far as the budget
        # allows (capped at 8192 rows -- already deep in the roofline regime).
        td = D
        tb = min(8192, (rows_budget // _LANE) * _LANE)
    else:
        # D is too wide for a 128-row full-D tile: tile the feature axis too.
        tb = _LANE
        cols_budget = vmem_budget_bytes // (2 * tb * itemsize)
        td = max(_LANE, (cols_budget // _LANE) * _LANE)
        td = min(td, pl.cdiv(D, _LANE) * _LANE)

    # v7x has two TensorCores: keep at least 2 batch-grid steps when B allows
    # so dimension_semantics=("parallel", ...) can shard the batch axis.
    if B >= 2 * _LANE:
        tb = min(tb, max(_LANE, (B // 2) // _LANE * _LANE))
    # Never exceed the (padded) batch.
    tb = min(tb, pl.cdiv(B, _LANE) * _LANE)

    # Prefer a tb that divides B exactly (skips the padding pass over x).
    if B % tb != 0:
        for cand in range(tb, _LANE - 1, -_LANE):
            if B % cand == 0:
                tb = cand
                break
    return tb, td


def _pallas_mean(x, w, tb, td):
    """mean[b] = sum_d x[b, d] * w[0, d], via the tiled Pallas kernel."""
    B, D = x.shape
    num_bt = pl.cdiv(B, tb)
    num_dt = pl.cdiv(D, td)
    B_pad, D_pad = num_bt * tb, num_dt * td

    if B_pad != B or D_pad != D:
        x = jnp.pad(x, ((0, B_pad - B), (0, D_pad - D)))
    if D_pad != D:
        w = jnp.pad(w, ((0, 0), (0, D_pad - D)))

    out = pl.pallas_call(
        _bkr_mean_kernel,
        out_shape=jax.ShapeDtypeStruct((1, B_pad), jnp.float32),
        grid=(num_bt, num_dt),
        in_specs=[
            pl.BlockSpec((tb, td), lambda i, k: (i, k)),   # streamed x tiles
            pl.BlockSpec((1, td), lambda i, k: (0, k)),    # column-sum chunk
        ],
        # Lane-dense (1, tb) row per batch tile; same block across the feature
        # axis -> resident accumulator.
        out_specs=pl.BlockSpec((1, tb), lambda i, k: (0, i)),
        compiler_params=pltpu.CompilerParams(
            dimension_semantics=("parallel", "arbitrary"),
        ),
    )(x, w)

    return out[0, :B]


def bayesian_kernel_regression(x, kernel, log_scale, *, use_pallas=None):
    """Forward pass of BayesianKernelRegression.

    Args:
      x:          [B, input_dim]
      kernel:     [input_dim, kernel_dim]
      log_scale:  scalar
      use_pallas: force/skip the Pallas path (None = auto-dispatch on size).

    Returns:
      (mean [B] float32, scale scalar float32)
    """
    B, D = x.shape
    D2, K = kernel.shape
    assert D == D2

    # Algebraic collapse: mean = x @ kernel.sum(axis=1).  Column-sum computed
    # once, in f32, in plain XLA.
    w = jnp.sum(kernel.astype(jnp.float32), axis=1).reshape(1, D)
    # Scalar exp stays in plain XLA (free; no VMEM round-trip).
    scale = jnp.exp(jnp.asarray(log_scale, jnp.float32))

    if use_pallas is None:
        # pallas_call launch / pipeline-prime overhead dwarfs the work for
        # small batches; let XLA fuse the multiply+reduce there.
        use_pallas = B >= 2048

    if not use_pallas:
        mean = jnp.sum(x.astype(jnp.float32) * w, axis=1)
        return mean, scale

    tb, td = _pick_tiles(B, D)
    # Keep the in-kernel dot dtype-homogeneous (no per-element cast of the
    # large x tile inside the kernel).
    w = w.astype(x.dtype)
    mean = _pallas_mean(x, w, tb, td)
    return mean, scale


if __name__ == "__main__":
    key = jax.random.PRNGKey(0)
    kk, kx1, kx2 = jax.random.split(key, 3)

    input_dim, kernel_dim = 32, 16
    kernel = jax.random.normal(kk, (input_dim, kernel_dim), dtype=jnp.float32)
    log_scale = jnp.float32(0.0)
    ref_scale = jnp.exp(log_scale)

    # Two small cases: the module's toy batch (padded to one 128-row tile) and
    # a ragged multi-tile batch (exercises padding + multi-step grid).
    for B, kb in ((8, kx1), (1000, kx2)):
        x = jax.random.normal(kb, (B, input_dim), dtype=jnp.float32)

        mean, scale = bayesian_kernel_regression(x, kernel, log_scale, use_pallas=True)
        jax.block_until_ready((mean, scale))

        ref_mean = jnp.sum(x @ kernel, axis=1)
        assert mean.shape == (B,)
        assert jnp.allclose(mean, ref_mean, atol=1e-3, rtol=1e-3), (B, "pallas mean mismatch")
        assert jnp.allclose(scale, ref_scale, atol=1e-6), "scale mismatch"

    # Auto-dispatch path (small B -> fused XLA fallback) sanity check.
    x_small = jax.random.normal(kx1, (8, input_dim), dtype=jnp.float32)
    mean_auto, scale_auto = bayesian_kernel_regression(x_small, kernel, log_scale)
    jax.block_until_ready((mean_auto, scale_auto))
    assert jnp.allclose(mean_auto, jnp.sum(x_small @ kernel, axis=1), atol=1e-3, rtol=1e-3)

    print("KERNEL_OK")
</pallas_src>

<mosaic_0001>
module attributes {stable_mosaic.version = 11 : i64} {
  func.func @_bkr_mean_kernel(%arg0: i32, %arg1: i32, %arg2: memref<128x32xf32, #tpu.memory_space<vmem>>, %arg3: memref<1x32xf32, #tpu.memory_space<vmem>>, %arg4: memref<1x128xf32, #tpu.memory_space<vmem>>) attributes {dimension_semantics = [#tpu.dimension_semantics<parallel>, #tpu.dimension_semantics<arbitrary>], iteration_bounds = array<i64: 1, 1>, scalar_prefetch = 0 : i64, scratch_operands = 0 : i64, tpu.core_type = #tpu.core_type<tc>, window_params = [{transform_indices = @transform_0, window_bounds = array<i64: 128, 32>}, {transform_indices = @transform_1, window_bounds = array<i64: 1, 32>}, {transform_indices = @transform_2, window_bounds = array<i64: 1, 128>}]} {
    %c0 = arith.constant 0 : index
    %c0_0 = arith.constant 0 : index
    %0 = vector.load %arg3[%c0, %c0_0] : memref<1x32xf32, #tpu.memory_space<vmem>>, vector<1x32xf32>
    %c0_1 = arith.constant 0 : index
    %c0_2 = arith.constant 0 : index
    %1 = vector.load %arg2[%c0_1, %c0_2] : memref<128x32xf32, #tpu.memory_space<vmem>>, vector<128x32xf32>
    %2 = tpu.transpose %1, [1, 0] : vector<128x32xf32> -> vector<32x128xf32>
    %cst = arith.constant dense<0.000000e+00> : vector<1x128xf32>
    %3 = tpu.matmul %0, %2, %cst {dimension_numbers = #tpu.dot_dimension_numbers<[1], [0], [0], [1], [0, 0, 1, 1], [], []>} : vector<1x32xf32>, vector<32x128xf32>, vector<1x128xf32> -> vector<1x128xf32>
    %c0_i32 = arith.constant 0 : i32
    %4 = arith.cmpi eq, %arg1, %c0_i32 : i32
    %5 = arith.extui %4 : i1 to i32
    %c0_i32_3 = arith.constant 0 : i32
    %6 = arith.cmpi ne, %5, %c0_i32_3 : i32
    scf.if %6 {
      %c0_6 = arith.constant 0 : index
      %c0_7 = arith.constant 0 : index
      %10 = vector.load %arg4[%c0_6, %c0_7] : memref<1x128xf32, #tpu.memory_space<vmem>>, vector<1x128xf32>
      tpu.vector_store %arg4[%c0_6, %c0_7], %3 {strides = array<i32>} : memref<1x128xf32, #tpu.memory_space<vmem>>, vector<1x128xf32>,
    } else {
    }
    %c0_i32_4 = arith.constant 0 : i32
    %7 = arith.cmpi ne, %arg1, %c0_i32_4 : i32
    %8 = arith.extui %7 : i1 to i32
    %c0_i32_5 = arith.constant 0 : i32
    %9 = arith.cmpi ne, %8, %c0_i32_5 : i32
    scf.if %9 {
      %c0_6 = arith.constant 0 : index
      %c0_7 = arith.constant 0 : index
      %10 = vector.load %arg4[%c0_6, %c0_7] : memref<1x128xf32, #tpu.memory_space<vmem>>, vector<1x128xf32>
      %11 = arith.addf %10, %3 : vector<1x128xf32>
      %c0_8 = arith.constant 0 : index
      %c0_9 = arith.constant 0 : index
      %12 = vector.load %arg4[%c0_8, %c0_9] : memref<1x128xf32, #tpu.memory_space<vmem>>, vector<1x128xf32>
      tpu.vector_store %arg4[%c0_8, %c0_9], %11 {strides = array<i32>} : memref<1x128xf32, #tpu.memory_space<vmem>>, vector<1x128xf32>,
    } else {
    }
    return
  }
  func.func @transform_0(%arg0: i32, %arg1: i32) -> (i32, i32) {
    %c0_i32 = arith.constant 0 : i32
    return %arg0, %arg1 : i32, i32
  }
  func.func @transform_1(%arg0: i32, %arg1: i32) -> (i32, i32) {
    %c0_i32 = arith.constant 0 : i32
    %c0_i32_0 = arith.constant 0 : i32
    return %c0_i32, %arg1 : i32, i32
  }
  func.func @transform_2(%arg0: i32, %arg1: i32) -> (i32, i32) {
    %c0_i32 = arith.constant 0 : i32
    %c0_i32_0 = arith.constant 0 : i32
    return %c0_i32, %arg0 : i32, i32
  }
}

</mosaic_0001>

<llo_original>
// kernel: tpu_custom_call.1
$region0: #{tpu_custom_call.1}
  #allocation0 [shape = 'u32[]', space=smem, size = 0x4, offset = 0x4, fixed_abs, tag = 'smem constant byte address 0x4 - core index']
  #allocation1 [shape = 'u32[144,128]{1,0:T(1,128)}', space=vmem, size = 0x12000, scoped, tag = 'internal scratch']
  %s0 = inlined_call_operand.vmem [shape: f32[128,32], index: 0, kind: input, shape index: {}]
  %s1 = inlined_call_operand.vmem [shape: f32[1,32], index: 1, kind: input, shape index: {}]
  %s2 = inlined_call_operand.hbm [shape: f32[1,128], index: 2, kind: output, shape index: {}]
  %s3 = sld [smem:[#allocation0]]
  $region26: #{tpu_custom_call.1} parent=0
    _
  %s5 = ssub.s32 1, %s3
  %s6 = scalar_select 0, %s5, %s3
  $region1: #{tpu_custom_call.1} parent=0
    #allocation2 [shape = 'u8[512]{0}', space=vmem, size = 0x400, scoped, tag = 'output window, operand 0, single buffered']
    #allocation3 [shape = 's32[1]{0}', space=sflag, size = 0x4, scoped, tag = 'scoped memory for tpu_custom_call.1']
    %7 = vsyncpa [#allocation3], 0
    // Predicated region
    $region2: #{tpu_custom_call.1} parent=1 // pred_check
      _
    $region3: #{tpu_custom_call.1} parent=1 // pred_check_branch
      %9 = sbr.rel (0) target = $region5
    $region4: #{tpu_custom_call.1} parent=1 // pred_region
      _
    $region5: #{tpu_custom_call.1} parent=1 // pred_fallthru
      _
    // Predicated region
    $region6: #{tpu_custom_call.1} parent=1 // pred_check
      _
    $region7: #{tpu_custom_call.1} parent=1 // pred_check_branch
      %11 = sbr.rel (0) target = $region9
    $region8: #{tpu_custom_call.1} parent=1 // pred_region
      _
    $region9: #{tpu_custom_call.1} parent=1 // pred_fallthru
      _
    %v12 = vld [vmem:[%s1] sm:$0x1]
    %v13 = vld [vmem:[%s0] sm:$0xff]
    %v14 = vld [vmem:[%s0 + $0x8] sm:$0xff]
    %v15 = vld [vmem:[%s0 + $0x10] sm:$0xff]
    %v16 = vld [vmem:[%s0 + $0x18] sm:$0xff]
    %v17 = vld [vmem:[%s0 + $0x20] sm:$0xff]
    %v18 = vld [vmem:[%s0 + $0x28] sm:$0xff]
    %v19 = vld [vmem:[%s0 + $0x30] sm:$0xff]
    %v20 = vld [vmem:[%s0 + $0x38] sm:$0xff]
    %v21 = vld [vmem:[%s0 + $0x40] sm:$0xff]
    %v22 = vld [vmem:[%s0 + $0x48] sm:$0xff]
    %v23 = vld [vmem:[%s0 + $0x50] sm:$0xff]
    %v24 = vld [vmem:[%s0 + $0x58] sm:$0xff]
    %v25 = vld [vmem:[%s0 + $0x60] sm:$0xff]
    %v26 = vld [vmem:[%s0 + $0x68] sm:$0xff]
    %v27 = vld [vmem:[%s0 + $0x70] sm:$0xff]
    %v28 = vld [vmem:[%s0 + $0x78] sm:$0xff]
    %vm29 = vcmask 261120
    %v31 = vsel %vm29, %v12, 0
    %v34 = vsel %vm29, %v13, 0
    %v37 = vsel %vm29, %v14, 0
    %v40 = vsel %vm29, %v15, 0
    %v43 = vsel %vm29, %v16, 0
    %v46 = vsel %vm29, %v17, 0
    %v49 = vsel %vm29, %v18, 0
    %v52 = vsel %vm29, %v19, 0
    %v55 = vsel %vm29, %v20, 0
    %v58 = vsel %vm29, %v21, 0
    %v61 = vsel %vm29, %v22, 0
    %v64 = vsel %vm29, %v23, 0
    %v67 = vsel %vm29, %v24, 0
    %v70 = vsel %vm29, %v25, 0
    %v73 = vsel %vm29, %v26, 0
    %v76 = vsel %vm29, %v27, 0
    %v79 = vsel %vm29, %v28, 0
    %81 = vmatprep.subr.mxu0 0.0
    %82 = vmatpush1.xpose.msra.mxu0 %v34
    %83 = vmatprep.subr.mxu0 0.0
    %84 = vmatpush1.xpose.msra.mxu0 %v37
    %85 = vmatprep.subr.mxu0 0.0
    %86 = vmatpush1.xpose.msra.mxu0 %v40
    %87 = vmatprep.subr.mxu0 0.0
    %88 = vmatpush1.xpose.msra.mxu0 %v43
    %89 = vmatprep.subr.mxu0 0.0
    %90 = vmatpush1.xpose.msra.mxu0 %v46
    %91 = vmatprep.subr.mxu0 0.0
    %92 = vmatpush1.xpose.msra.mxu0 %v49
    %93 = vmatprep.subr.mxu0 0.0
    %94 = vmatpush1.xpose.msra.mxu0 %v52
    %95 = vmatprep.subr.mxu0 0.0
    %96 = vmatpush1.xpose.msra.mxu0 %v55
    %97 = vmatprep.subr.mxu0 0.0
    %98 = vmatpush1.xpose.msra.mxu0 %v58
    %99 = vmatprep.subr.mxu0 0.0
    %100 = vmatpush1.xpose.msra.mxu0 %v61
    %101 = vmatprep.subr.mxu0 0.0
    %102 = vmatpush1.xpose.msra.mxu0 %v64
    %103 = vmatprep.subr.mxu0 0.0
    %104 = vmatpush1.xpose.msra.mxu0 %v67
    %105 = vmatprep.subr.mxu0 0.0
    %106 = vmatpush1.xpose.msra.mxu0 %v70
    %107 = vmatprep.subr.mxu0 0.0
    %108 = vmatpush1.xpose.msra.mxu0 %v73
    %109 = vmatprep.subr.mxu0 0.0
    %110 = vmatpush1.xpose.msra.mxu0 %v76
    %111 = vmatprep.subr.mxu0 0.0
    %112 = vmatpush1.xpose.msra.mxu0 %v79
    %113 = vmatprep.subr.mxu0 0.0
    %114 = vmatpush1.xpose.msra.mxu0 0.0
    %115 = vmatprep.subr.mxu0 0.0
    %116 = vmatpush1.xpose.msra.mxu0 0.0
    %117 = vmatprep.subr.mxu0 0.0
    %118 = vmatpush1.xpose.msra.mxu0 0.0
    %119 = vmatprep.subr.mxu0 0.0
    %120 = vmatpush1.xpose.msra.mxu0 0.0
    %121 = vmatprep.subr.mxu0 0.0
    %122 = vmatpush1.xpose.msra.mxu0 0.0
    %123 = vmatprep.subr.mxu0 0.0
    %124 = vmatpush1.xpose.msra.mxu0 0.0
    %125 = vmatprep.subr.mxu0 0.0
    %126 = vmatpush1.xpose.msra.mxu0 0.0
    %127 = vmatprep.subr.mxu0 0.0
    %128 = vmatpush1.xpose.msra.mxu0 0.0
    %129 = vmatprep.subr.mxu0 0.0
    %130 = vmatpush1.xpose.msra.mxu0 0.0
    %131 = vmatprep.subr.mxu0 0.0
    %132 = vmatpush1.xpose.msra.mxu0 0.0
    %133 = vmatprep.subr.mxu0 0.0
    %134 = vmatpush1.xpose.msra.mxu0 0.0
    %135 = vmatprep.subr.mxu0 0.0
    %136 = vmatpush1.xpose.msra.mxu0 0.0
    %137 = vmatprep.subr.mxu0 0.0
    %138 = vmatpush1.xpose.msra.mxu0 0.0
    %139 = vmatprep.subr.mxu0 0.0
    %140 = vmatpush1.xpose.msra.mxu0 0.0
    %141 = vmatprep.subr.mxu0 0.0
    %142 = vmatpush1.xpose.msra.mxu0 0.0
    %143 = vmatprep.subr.mxu0 0.0
    %144 = vmatpush1.xpose.msra.mxu0 0.0
    %145 = vmatprep.mubr.f32.mxu0 0.0
    %146 = vmatmul.mubr.f32.gmra.mrb[0].mxu0 %v31
    %v147 = vpop.f32.mrb[0].mxu0
    %v148 = vadd.f32 0.0, %v147
    %v149 = vpop.f32.mrb[0].mxu0
    %150 = vdwg.mxu0
    %p151 = scmp.eq.s32.totalorder 0, 0
    // Predicated region
    $region10: #{tpu_custom_call.1} parent=1 // pred_check
      %p152 = pneg %p151
    $region11: #{tpu_custom_call.1} parent=1 // pred_check_branch
      %154 = sbr.rel (%p152) target = $region13
    $region12: #{tpu_custom_call.1} parent=1 // pred_region
      %155 = vst [vmem:[#allocation2] sm:$0x1] %v148
    $region13: #{tpu_custom_call.1} parent=1 // pred_fallthru
      _
    %p156 = scmp.ne.s32.totalorder 0, 0
    // Predicated region
    $region14: #{tpu_custom_call.1} parent=1 // pred_check
      %p157 = pneg %p156
    $region15: #{tpu_custom_call.1} parent=1 // pred_check_branch
      %159 = sbr.rel (%p157) target = $region17
    $region16: #{tpu_custom_call.1} parent=1 // pred_region
      %v160 = vld [vmem:[#allocation2] sm:$0x1]
      %v161 = vadd.f32 %v160, %v148
      %162 = vst [vmem:[#allocation2] sm:$0x1] %v161
    $region17: #{tpu_custom_call.1} parent=1 // pred_fallthru
      _
    // Predicated region
    $region18: #{tpu_custom_call.1} parent=1 // pred_check
      _
    $region19: #{tpu_custom_call.1} parent=1 // pred_check_branch
      %164 = sbr.rel (0) target = $region21
    $region20: #{tpu_custom_call.1} parent=1 // pred_region
      %s166 = ssub.s32 16, 16
      %167 = vsyncadd [#allocation3], %s166
      %s169 = sshll.u32 [#allocation2], 4
      %s170 = int_to_ptr.vmem [resolvable:$true] %s169
      %172 = dma.vmem_to_hbm [thread:$0]  %s170, 16, %s2, [#allocation3]
    $region21: #{tpu_custom_call.1} parent=1 // pred_fallthru
      _
    // Predicated region
    $region22: #{tpu_custom_call.1} parent=1 // pred_check
      _
    $region23: #{tpu_custom_call.1} parent=1 // pred_check_branch
      %174 = sbr.rel (0) target = $region25
    $region24: #{tpu_custom_call.1} parent=1 // pred_region
      %175 = dma.done [#allocation3], 16
    $region25: #{tpu_custom_call.1} parent=1 // pred_fallthru
      _
    %176 = vsyncpa [#allocation3], 1

</llo_original>
